<compile_context>
chip_gen: v5e
topology: v5e:2x2
jax: 0.10.0
libtpu: 0.0.40
codegen_flags: <defaults>
</compile_context>

<pallas_src>
import functools

import jax
import jax.numpy as jnp
from jax.experimental import pallas as pl
from jax.experimental.pallas import tpu as pltpu


def _cube_kernel(x_ref, o_ref):
    x = x_ref[...]
    # two VPU multiplies; no transcendental pow
    o_ref[...] = x * x * x


_LANE_CHOICES = (8192, 4096, 2048, 1024, 512, 256, 128)


def _sublane_multiple(dtype) -> int:
    """Sublane packing multiple: 8 for 32-bit, 16 for 16-bit, 32 for 8-bit."""
    return max(8, 32 // jnp.dtype(dtype).itemsize)


@functools.lru_cache(maxsize=None)
def _chip_tuning():
    """(block_bytes_per_operand, vmem_limit_bytes) based on physical VMEM."""
    try:
        vmem_bytes = int(pltpu.get_tpu_info().vmem_capacity_bytes)
    except Exception:
        vmem_bytes = 64 << 20  # conservative: assume v7x-sized VMEM
    if vmem_bytes >= (100 << 20):
        # v5e / v6e: 128 MiB physical. 16 MiB/operand double-buffered in+out
        # = 64 MiB footprint; 96 MiB scoped limit leaves Mosaic scratch room.
        return 16 << 20, 96 << 20
    # v7x: 64 MiB physical. 8 MiB/operand -> 32 MiB footprint under a 48 MiB
    # scoped limit.
    return 8 << 20, 48 << 20


def _pick_layout(n, itemsize, sub, block_bytes):
    """Pick (lanes, rows, block_rows) for a flat array of n elements.

    Returns None when n is not a multiple of 128 (no lane-dense factorization
    without padding) -- caller falls back to plain JAX.
    """
    divisible = [L for L in _LANE_CHOICES if n % L == 0]
    if not divisible:
        return None
    # Prefer a lane width whose row count is a multiple of the sublane packing
    # (no packed-layout / masked edge rows); widest such lanes first.
    friendly = [L for L in divisible if (n // L) % sub == 0 or (n // L) == 1]
    lanes = friendly[0] if friendly else divisible[0]
    rows = n // lanes

    # Byte-targeted block size, rounded to the sublane multiple.
    max_block_rows = max(sub, ((block_bytes // itemsize) // lanes) // sub * sub)

    # Keep >=4 grid steps when rows allow: enables input-DMA/output-DMA overlap
    # and lets v7x's two TensorCores split the "parallel" axis.
    min_steps = 4
    if rows >= min_steps * sub:
        cap = min(max_block_rows, max(sub, (rows // min_steps) // sub * sub))
    else:
        cap = min(max_block_rows, rows)
    cap = min(cap, rows)

    if cap < sub:
        # Fewer rows than one sublane tile: a full-extent block is always legal.
        return lanes, rows, rows

    # Prefer a block_rows that divides rows exactly (no ragged / masked last
    # block), but never shrink below half the cap to find one.
    block_rows = cap
    b = cap
    while b >= max(sub, cap // 2):
        if rows % b == 0:
            block_rows = b
            break
        b -= sub
    return lanes, rows, block_rows


def cube(t: jax.Array, *, donate: bool = False,
         min_kernel_elems: int = 1 << 16) -> jax.Array:
    """Elementwise t**3. Pallas TPU kernel for large tensors, plain JAX otherwise."""
    n = t.size
    if n == 0:
        return t

    itemsize = jnp.dtype(t.dtype).itemsize
    sub = _sublane_multiple(t.dtype)
    block_bytes, vmem_limit = _chip_tuning()

    layout = None
    if n >= min_kernel_elems:
        layout = _pick_layout(n, itemsize, sub, block_bytes)
    if layout is None:
        # Tiny input, or size not a multiple of 128: XLA's fused elementwise is
        # one HBM read + one write (already at the roofline) with no launch /
        # pipeline-prologue overhead and no pad/slice extra passes.
        return t * t * t

    lanes, rows, block_rows = layout
    orig_shape = t.shape
    x2d = t.reshape(rows, lanes)  # contiguous reshape: no data movement

    grid = (pl.cdiv(rows, block_rows),)
    out2d = pl.pallas_call(
        _cube_kernel,
        out_shape=jax.ShapeDtypeStruct((rows, lanes), t.dtype),
        grid_spec=pltpu.PrefetchScalarGridSpec(
            num_scalar_prefetch=0,
            grid=grid,
            in_specs=[pl.BlockSpec((block_rows, lanes), lambda i: (i, 0))],
            out_specs=pl.BlockSpec((block_rows, lanes), lambda i: (i, 0)),
        ),
        compiler_params=pltpu.CompilerParams(
            dimension_semantics=("parallel",),
            vmem_limit_bytes=vmem_limit,
        ),
        # Opt-in only: halves peak HBM footprint under a donating jit, but
        # forces a defensive copy otherwise.
        input_output_aliases=({0: 0} if donate else {}),
    )(x2d)

    return out2d.reshape(orig_shape)


if __name__ == "__main__":
    key = jax.random.PRNGKey(0)
    k1, k2 = jax.random.split(key)

    # Canonical small NCHW input consistent with the module's typical use.
    x_small = jax.random.normal(k1, (2, 4, 16, 16), dtype=jnp.float32)

    # Both the fast path and the forced-kernel path must match the reference.
    y_fast = cube(x_small)
    y_kern = cube(x_small, min_kernel_elems=0)  # force the Pallas kernel
    jax.block_until_ready((y_fast, y_kern))
    ref_small = x_small ** 3
    assert y_fast.shape == x_small.shape and y_fast.dtype == x_small.dtype
    assert jnp.allclose(y_fast, ref_small, atol=1e-6, rtol=1e-6)
    assert y_kern.shape == x_small.shape and y_kern.dtype == x_small.dtype
    assert jnp.allclose(y_kern, ref_small, atol=1e-6, rtol=1e-6)

    # Moderate f32 input exercising the tiled multi-block path:
    # 4*8*48*48 = 73728 elems -> lanes=1024, rows=72 (multiple of 8),
    # block_rows divides rows -> no masked edge block, grid >= 4 steps.
    x_big = jax.random.normal(k2, (4, 8, 48, 48), dtype=jnp.float32)
    y_big = cube(x_big)
    jax.block_until_ready(y_big)
    assert jnp.allclose(y_big, x_big ** 3, atol=1e-6, rtol=1e-6)

    # bf16 path: verifies dtype-aware sublane alignment (block rows multiple
    # of 16) and byte-sized blocks. Compare against an f32 reference loosely.
    x_bf = x_big.astype(jnp.bfloat16)
    y_bf = cube(x_bf, min_kernel_elems=0)
    jax.block_until_ready(y_bf)
    ref_bf = x_bf.astype(jnp.float32) ** 3
    assert y_bf.dtype == jnp.bfloat16 and y_bf.shape == x_bf.shape
    assert jnp.allclose(y_bf.astype(jnp.float32), ref_bf, rtol=5e-2, atol=5e-2)

    print("KERNEL_OK")
</pallas_src>

<mosaic_0001>
module attributes {stable_mosaic.version = 11 : i64} {
  func.func @_cube_kernel(%arg0: i32, %arg1: memref<1x2048xf32, #tpu.memory_space<vmem>>, %arg2: memref<1x2048xf32, #tpu.memory_space<vmem>>) attributes {dimension_semantics = [#tpu.dimension_semantics<parallel>], iteration_bounds = array<i64: 1>, scalar_prefetch = 0 : i64, scratch_operands = 0 : i64, tpu.core_type = #tpu.core_type<tc>, window_params = [{transform_indices = @transform_0, window_bounds = array<i64: 1, 2048>}, {transform_indices = @transform_1, window_bounds = array<i64: 1, 2048>}]} {
    %c0 = arith.constant 0 : index
    %c0_0 = arith.constant 0 : index
    %0 = vector.load %arg1[%c0, %c0_0] : memref<1x2048xf32, #tpu.memory_space<vmem>>, vector<1x2048xf32>
    %1 = arith.mulf %0, %0 : vector<1x2048xf32>
    %2 = arith.mulf %1, %0 : vector<1x2048xf32>
    %c0_1 = arith.constant 0 : index
    %c0_2 = arith.constant 0 : index
    %3 = vector.load %arg2[%c0_1, %c0_2] : memref<1x2048xf32, #tpu.memory_space<vmem>>, vector<1x2048xf32>
    tpu.vector_store %arg2[%c0_1, %c0_2], %2 {strides = array<i32>} : memref<1x2048xf32, #tpu.memory_space<vmem>>, vector<1x2048xf32>,
    return
  }
  func.func @transform_0(%arg0: i32) -> (i32, i32) {
    %c0_i32 = arith.constant 0 : i32
    %c0_i32_0 = arith.constant 0 : i32
    return %arg0, %c0_i32 : i32, i32
  }
  func.func @transform_1(%arg0: i32) -> (i32, i32) {
    %c0_i32 = arith.constant 0 : i32
    %c0_i32_0 = arith.constant 0 : i32
    return %arg0, %c0_i32 : i32, i32
  }
}

</mosaic_0001>

<llo_original>
// kernel: tpu_custom_call.1
$region0: #{tpu_custom_call.1}
  #allocation0 [shape = 'u32[]', space=smem, size = 0x4, offset = 0x4, fixed_abs, tag = 'smem constant byte address 0x4 - core index']
  #allocation1 [shape = 'u32[72,128]{1,0:T(1,128)}', space=vmem, size = 0x9000, scoped, tag = 'internal scratch']
  %s0 = inlined_call_operand.hbm [shape: f32[1,2048], index: 0, kind: input, shape index: {}]
  %s1 = inlined_call_operand.hbm [shape: f32[1,2048], index: 1, kind: output, shape index: {}]
  %s2 = sld [smem:[#allocation0]]
  $region18: #{tpu_custom_call.1} parent=0
    _
  %s4 = ssub.s32 1, %s2
  %s5 = scalar_select 0, %s4, %s2
  $region1: #{tpu_custom_call.1} parent=0
    #allocation2 [shape = 'u8[8192]{0}', space=vmem, size = 0x2000, scoped, tag = 'input window, operand 0, single buffered']
    #allocation3 [shape = 's32[1]{0}', space=sflag, size = 0x4, scoped, tag = 'scoped memory for tpu_custom_call.1']
    #allocation4 [shape = 's32[1]{0}', space=sflag, size = 0x4, scoped, tag = 'scoped memory for tpu_custom_call.1']
    #allocation5 [shape = 'u8[8192]{0}', space=vmem, size = 0x2000, scoped, tag = 'output window, operand 0, single buffered']
    %6 = vsyncpa [#allocation3], 0
    %7 = vsyncpa [#allocation4], 0
    // Predicated region
    $region2: #{tpu_custom_call.1} parent=1 // pred_check
      _
    $region3: #{tpu_custom_call.1} parent=1 // pred_check_branch
      %9 = sbr.rel (0) target = $region5
    $region4: #{tpu_custom_call.1} parent=1 // pred_region
      %11 = vsyncadd [#allocation3], 0
      %s13 = sshll.u32 %s0, 4
      %s14 = int_to_ptr.hbm [resolvable:$true] %s13
      %s15 = sshll.u32 [#allocation2], 4
      %s16 = int_to_ptr.vmem [resolvable:$true] %s15
      %18 = dma.hbm_to_vmem [thread:$0]  %s14, 256, %s16, [#allocation3]
    $region5: #{tpu_custom_call.1} parent=1 // pred_fallthru
      _
    // Predicated region
    $region6: #{tpu_custom_call.1} parent=1 // pred_check
      _
    $region7: #{tpu_custom_call.1} parent=1 // pred_check_branch
      %20 = sbr.rel (0) target = $region9
    $region8: #{tpu_custom_call.1} parent=1 // pred_region
      %22 = dma.done [#allocation3], 256
    $region9: #{tpu_custom_call.1} parent=1 // pred_fallthru
      _
    %v23 = vld [vmem:[#allocation2] sm:$0xff]
    %v24 = vld [vmem:[#allocation2 + $0x8] sm:$0xff]
    %v25 = vmul.f32 %v23, %v23
    %v26 = vmul.f32 %v24, %v24
    %v27 = vmul.f32 %v25, %v23
    %v28 = vmul.f32 %v26, %v24
    %29 = vst [vmem:[#allocation5] sm:$0xff] %v27
    %30 = vst [vmem:[#allocation5 + $0x8] sm:$0xff] %v28
    // Predicated region
    $region10: #{tpu_custom_call.1} parent=1 // pred_check
      _
    $region11: #{tpu_custom_call.1} parent=1 // pred_check_branch
      %32 = sbr.rel (0) target = $region13
    $region12: #{tpu_custom_call.1} parent=1 // pred_region
      %34 = vsyncadd [#allocation4], 0
      %s36 = sshll.u32 [#allocation5], 4
      %s37 = int_to_ptr.vmem [resolvable:$true] %s36
      %s38 = sshll.u32 %s1, 4
      %s39 = int_to_ptr.hbm [resolvable:$true] %s38
      %41 = dma.vmem_to_hbm [thread:$0]  %s37, 256, %s39, [#allocation4]
    $region13: #{tpu_custom_call.1} parent=1 // pred_fallthru
      _
    // Predicated region
    $region14: #{tpu_custom_call.1} parent=1 // pred_check
      _
    $region15: #{tpu_custom_call.1} parent=1 // pred_check_branch
      %43 = sbr.rel (0) target = $region17
    $region16: #{tpu_custom_call.1} parent=1 // pred_region
      %45 = dma.done [#allocation4], 256
    $region17: #{tpu_custom_call.1} parent=1 // pred_fallthru
      _
    %46 = vsyncpa [#allocation3], 1
    %47 = vsyncpa [#allocation4], 1

</llo_original>
